<compile_context>
chip_gen: v7x
topology: tpu7x:2x2x1
jax: 0.10.0
libtpu: 0.0.40
codegen_flags: <defaults>
</compile_context>

<pallas_src>
import jax
import jax.numpy as jnp
from jax.experimental import pallas as pl
from jax.experimental.pallas import tpu as pltpu


def _sge_kernel(w_ref, b_ref, x_ref, o_ref):
    # w_ref, b_ref : VMEM f32[K, 1, 1]     per-(batch, group) affine params
    # x_ref, o_ref : VMEM    [K, Cpg, HW]  K (batch, group) slabs, unpadded HW
    x = x_ref[...]
    xf = x.astype(jnp.float32)
    hw = x.shape[2]                       # static (block dim == full array dim)

    inv_hw = jnp.float32(1.0 / hw)

    # ---- adaptive avg pool over spatial dims (per channel, per slab) ----
    ch_mean = jnp.sum(xf, axis=2, keepdims=True) * inv_hw        # (K, Cpg, 1)

    # ---- xn = sum_c x[c] * avgpool(x)[c] -> one spatial map per slab ----
    xn = jnp.sum(xf * ch_mean, axis=1, keepdims=True)            # (K, 1, HW)
    # xf is dead after this point for bf16 inputs; the gating below re-uses
    # the original-precision tile so no full f32 slab copy stays live.

    # ---- normalize over spatial positions (torch.std is unbiased, ddof=1) ----
    mu = jnp.sum(xn, axis=2, keepdims=True) * inv_hw             # (K, 1, 1)
    t = xn - mu
    inv_dof = jnp.float32(1.0 / max(hw - 1, 1))                  # guard hw == 1
    var = jnp.sum(t * t, axis=2, keepdims=True) * inv_dof        # (K, 1, 1)
    std = jnp.sqrt(var) + jnp.float32(1e-5)
    t = t / std

    # ---- per-slab scale/shift + sigmoid gate ----
    t = t * w_ref[...] + b_ref[...]                              # (K, 1, HW)
    gate = jax.nn.sigmoid(t)                                     # f32
    if x.dtype != jnp.float32:
        gate = gate.astype(x.dtype)   # bf16 gating: rounds once, keeps temps narrow

    o_ref[...] = (x * gate).astype(o_ref.dtype)


def _round_up(v, m):
    return ((v + m - 1) // m) * m


def _pick_block_k(bg, max_k):
    """Largest divisor of bg that is <= max_k, keeping >= 4 grid steps.

    >= 4 steps guarantees each of v7x's two TensorCores gets >= 2 steps, so
    the i+1 prefetch / i-1 writeback overlap is active on both cores.
    """
    cap = max(1, min(max_k, bg // 4 if bg >= 4 else bg))
    for k in range(cap, 0, -1):
        if bg % k == 0:
            return k
    return 1


def spatial_group_enhance(x, weight, bias, groups=8):
    """x: [B, C, H, W] (NCHW, f32 or bf16); weight, bias: [1, groups, 1, 1]."""
    b, c, h, w = x.shape
    assert c % groups == 0
    cpg = c // groups
    hw = h * w
    bg = b * groups

    # Unpadded slab layout.  NOTE: no jnp.pad / output slice — the block's
    # last two dims equal the full array dims, which is legal regardless of
    # (8,128) alignment; masked tail stores cost far less than extra HBM passes.
    x_r = x.reshape(bg, cpg, hw)

    # Per-slab affine params: slab i = (batch, group) -> weight[i % groups].
    w_slab = jnp.tile(weight.reshape(groups).astype(jnp.float32), b).reshape(bg, 1, 1)
    b_slab = jnp.tile(bias.reshape(groups).astype(jnp.float32), b).reshape(bg, 1, 1)

    # ---- generation-aware VMEM budget -> slabs per grid step (k_block) ----
    itemsize = jnp.dtype(x.dtype).itemsize
    try:
        vmem_cap = int(pltpu.get_tpu_info().vmem_capacity_bytes)
    except Exception:  # interpret mode / query unavailable -> conservative
        vmem_cap = 64 * 1024 * 1024
    # ~96 MiB on 128-MiB parts (v5e/v6e), ~48 MiB on 64-MiB v7x.
    vmem_limit = min((vmem_cap * 3) // 4, 96 * 1024 * 1024)

    cpg_pad = _round_up(cpg, 8)           # sublane padding inside VMEM
    hw_lpad = _round_up(hw, 128)          # lane padding inside VMEM
    slab_io = cpg_pad * hw_lpad * itemsize          # one slab, one buffer
    slab_f32 = cpg_pad * hw_lpad * 4                # in-body f32 temporaries
    param_bytes = 2 * 2 * 8 * 128 * 4               # 2 params x 2 bufs x (8,128) f32 tile
    per_slab = 4 * slab_io + slab_f32 + param_bytes  # dbl-buffered in+out + temps
    budget = (vmem_limit * 3) // 4                   # headroom for Mosaic scratch
    max_k = max(1, budget // per_slab)
    k_block = _pick_block_k(bg, max_k)
    grid = (bg // k_block,)

    # input_output_aliases deliberately NOT used: x_r is (possibly) a view of
    # the caller's array; aliasing it could force a defensive full-tensor copy.
    out = pl.pallas_call(
        _sge_kernel,
        out_shape=jax.ShapeDtypeStruct((bg, cpg, hw), x.dtype),
        grid_spec=pltpu.PrefetchScalarGridSpec(
            num_scalar_prefetch=0,
            grid=grid,
            in_specs=[
                pl.BlockSpec((k_block, 1, 1), lambda i: (i, 0, 0)),         # weight
                pl.BlockSpec((k_block, 1, 1), lambda i: (i, 0, 0)),         # bias
                pl.BlockSpec((k_block, cpg, hw), lambda i: (i, 0, 0)),      # x slabs
            ],
            out_specs=pl.BlockSpec((k_block, cpg, hw), lambda i: (i, 0, 0)),
        ),
        compiler_params=pltpu.CompilerParams(
            dimension_semantics=("parallel",),
            vmem_limit_bytes=vmem_limit,
        ),
        cost_estimate=pl.CostEstimate(
            flops=8 * bg * cpg * hw,
            transcendentals=2 * bg * hw,   # sigmoid lowers to exp + reciprocal
            bytes_accessed=2 * bg * cpg * hw * itemsize,
        ),
    )(w_slab, b_slab, x_r)

    return out.reshape(b, c, h, w)


def _reference(x, weight, bias, groups=8):
    """Pure-JAX reproduction of the PyTorch forward, for verification."""
    b, c, h, w = x.shape
    cpg = c // groups
    xg = x.reshape(b * groups, cpg, h, w)
    avg = jnp.mean(xg, axis=(2, 3), keepdims=True)
    xn = jnp.sum(xg * avg, axis=1, keepdims=True)            # (b*g, 1, h, w)
    t = xn.reshape(b * groups, -1)
    t = t - jnp.mean(t, axis=1, keepdims=True)
    std = jnp.std(t, axis=1, keepdims=True, ddof=1) + 1e-5   # torch std: unbiased
    t = t / std
    t = t.reshape(b, groups, h, w)
    t = t * weight + bias
    t = t.reshape(b * groups, 1, h, w)
    out = xg * jax.nn.sigmoid(t)
    return out.reshape(b, c, h, w)


if __name__ == "__main__":
    GROUPS = 8

    def run_case(key, shape, dtype, atol, rtol):
        kx, kw, kb = jax.random.split(key, 3)
        x32 = jax.random.normal(kx, shape, dtype=jnp.float32)
        # Module zero-inits weight/bias; use small nonzero values so the
        # affine + sigmoid path is exercised.
        weight = 0.1 * jax.random.normal(kw, (1, GROUPS, 1, 1), dtype=jnp.float32)
        bias = 0.1 * jax.random.normal(kb, (1, GROUPS, 1, 1), dtype=jnp.float32)
        x = x32.astype(dtype)

        out = spatial_group_enhance(x, weight, bias, groups=GROUPS)
        out = jax.block_until_ready(out)

        ref = _reference(x.astype(jnp.float32), weight, bias, groups=GROUPS).astype(dtype)
        assert out.shape == shape
        ok = jnp.allclose(out.astype(jnp.float32), ref.astype(jnp.float32),
                          atol=atol, rtol=rtol)
        assert ok, f"mismatch vs reference for shape={shape} dtype={dtype}"

    key = jax.random.PRNGKey(0)
    k1, k2, k3 = jax.random.split(key, 3)
    # 1) f32, H*W multiple of 128 (fully lane-dense stores)
    run_case(k1, (2, 32, 16, 16), jnp.float32, atol=1e-5, rtol=1e-5)
    # 2) f32, H*W = 63 (unaligned, unpadded path with masked tail)
    run_case(k2, (2, 16, 7, 9), jnp.float32, atol=1e-5, rtol=1e-5)
    # 3) bf16, H*W = 196 (bf16 gating path; rounded final multiply)
    run_case(k3, (2, 32, 14, 14), jnp.bfloat16, atol=2e-2, rtol=2e-2)

    print("KERNEL_OK")
</pallas_src>

<mosaic_0001>
module attributes {stable_mosaic.version = 11 : i64} {
  func.func @_sge_kernel(%arg0: i32, %arg1: memref<4x1x1xf32, #tpu.memory_space<vmem>>, %arg2: memref<4x1x1xf32, #tpu.memory_space<vmem>>, %arg3: memref<4x4x256xf32, #tpu.memory_space<vmem>>, %arg4: memref<4x4x256xf32, #tpu.memory_space<vmem>>) attributes {dimension_semantics = [#tpu.dimension_semantics<parallel>], iteration_bounds = array<i64: 4>, scalar_prefetch = 0 : i64, scratch_operands = 0 : i64, tpu.core_type = #tpu.core_type<tc>, window_params = [{transform_indices = @transform_0, window_bounds = array<i64: 4, 1, 1>}, {transform_indices = @transform_1, window_bounds = array<i64: 4, 1, 1>}, {transform_indices = @transform_2, window_bounds = array<i64: 4, 4, 256>}, {transform_indices = @transform_3, window_bounds = array<i64: 4, 4, 256>}]} {
    %c0 = arith.constant 0 : index
    %c0_0 = arith.constant 0 : index
    %c0_1 = arith.constant 0 : index
    %0 = vector.load %arg3[%c0, %c0_0, %c0_1] : memref<4x4x256xf32, #tpu.memory_space<vmem>>, vector<4x4x256xf32>
    %cst = arith.constant dense<0.000000e+00> : vector<4x4xf32>
    %1 = vector.multi_reduction <add>, %0, %cst [2] : vector<4x4x256xf32> to vector<4x4xf32>
    %2 = vector.shape_cast %1 : vector<4x4xf32> to vector<4x4x1xf32>
    %cst_2 = arith.constant 3.906250e-03 : f32
    %3 = vector.broadcast %cst_2 : f32 to vector<4x4x1xf32>
    %4 = arith.mulf %2, %3 : vector<4x4x1xf32>
    %5 = vector.broadcast %4 : vector<4x4x1xf32> to vector<4x4x256xf32>
    %6 = arith.mulf %0, %5 : vector<4x4x256xf32>
    %cst_3 = arith.constant dense<0.000000e+00> : vector<4x256xf32>
    %7 = vector.multi_reduction <add>, %6, %cst_3 [1] : vector<4x4x256xf32> to vector<4x256xf32>
    %8 = vector.shape_cast %7 : vector<4x256xf32> to vector<4x1x256xf32>
    %cst_4 = arith.constant dense<0.000000e+00> : vector<4x1xf32>
    %9 = vector.multi_reduction <add>, %8, %cst_4 [2] : vector<4x1x256xf32> to vector<4x1xf32>
    %10 = vector.shape_cast %9 : vector<4x1xf32> to vector<4x1x1xf32>
    %cst_5 = arith.constant 3.906250e-03 : f32
    %11 = vector.broadcast %cst_5 : f32 to vector<4x1x1xf32>
    %12 = arith.mulf %10, %11 : vector<4x1x1xf32>
    %13 = vector.broadcast %12 : vector<4x1x1xf32> to vector<4x1x256xf32>
    %14 = arith.subf %8, %13 : vector<4x1x256xf32>
    %15 = arith.mulf %14, %14 : vector<4x1x256xf32>
    %cst_6 = arith.constant dense<0.000000e+00> : vector<4x1xf32>
    %16 = vector.multi_reduction <add>, %15, %cst_6 [2] : vector<4x1x256xf32> to vector<4x1xf32>
    %17 = vector.shape_cast %16 : vector<4x1xf32> to vector<4x1x1xf32>
    %cst_7 = arith.constant 0.00392156886 : f32
    %18 = vector.broadcast %cst_7 : f32 to vector<4x1x1xf32>
    %19 = arith.mulf %17, %18 : vector<4x1x1xf32>
    %20 = math.sqrt %19 : vector<4x1x1xf32>
    %cst_8 = arith.constant 9.99999974E-6 : f32
    %21 = vector.broadcast %cst_8 : f32 to vector<4x1x1xf32>
    %22 = arith.addf %20, %21 : vector<4x1x1xf32>
    %23 = vector.broadcast %22 : vector<4x1x1xf32> to vector<4x1x256xf32>
    %24 = arith.divf %14, %23 : vector<4x1x256xf32>
    %c0_9 = arith.constant 0 : index
    %c0_10 = arith.constant 0 : index
    %c0_11 = arith.constant 0 : index
    %25 = vector.load %arg1[%c0_9, %c0_10, %c0_11] : memref<4x1x1xf32, #tpu.memory_space<vmem>>, vector<4x1x1xf32>
    %26 = vector.broadcast %25 : vector<4x1x1xf32> to vector<4x1x256xf32>
    %27 = arith.mulf %24, %26 : vector<4x1x256xf32>
    %c0_12 = arith.constant 0 : index
    %c0_13 = arith.constant 0 : index
    %c0_14 = arith.constant 0 : index
    %28 = vector.load %arg2[%c0_12, %c0_13, %c0_14] : memref<4x1x1xf32, #tpu.memory_space<vmem>>, vector<4x1x1xf32>
    %29 = vector.broadcast %28 : vector<4x1x1xf32> to vector<4x1x256xf32>
    %30 = arith.addf %27, %29 : vector<4x1x256xf32>
    %31 = arith.negf %30 : vector<4x1x256xf32>
    %32 = math.exp %31 : vector<4x1x256xf32>
    %cst_15 = arith.constant 1.000000e+00 : f32
    %33 = vector.broadcast %cst_15 : f32 to vector<4x1x256xf32>
    %34 = arith.addf %33, %32 : vector<4x1x256xf32>
    %35 = arith.divf %33, %34 : vector<4x1x256xf32>
    %36 = vector.broadcast %35 : vector<4x1x256xf32> to vector<4x4x256xf32>
    %37 = arith.mulf %0, %36 : vector<4x4x256xf32>
    %c0_16 = arith.constant 0 : index
    %c0_17 = arith.constant 0 : index
    %c0_18 = arith.constant 0 : index
    %38 = vector.load %arg4[%c0_16, %c0_17, %c0_18] : memref<4x4x256xf32, #tpu.memory_space<vmem>>, vector<4x4x256xf32>
    tpu.vector_store %arg4[%c0_16, %c0_17, %c0_18], %37 {strides = array<i32>} : memref<4x4x256xf32, #tpu.memory_space<vmem>>, vector<4x4x256xf32>,
    return
  }
  func.func @transform_0(%arg0: i32) -> (i32, i32, i32) {
    %c0_i32 = arith.constant 0 : i32
    %c0_i32_0 = arith.constant 0 : i32
    %c0_i32_1 = arith.constant 0 : i32
    return %arg0, %c0_i32, %c0_i32_0 : i32, i32, i32
  }
  func.func @transform_1(%arg0: i32) -> (i32, i32, i32) {
    %c0_i32 = arith.constant 0 : i32
    %c0_i32_0 = arith.constant 0 : i32
    %c0_i32_1 = arith.constant 0 : i32
    return %arg0, %c0_i32, %c0_i32_0 : i32, i32, i32
  }
  func.func @transform_2(%arg0: i32) -> (i32, i32, i32) {
    %c0_i32 = arith.constant 0 : i32
    %c0_i32_0 = arith.constant 0 : i32
    %c0_i32_1 = arith.constant 0 : i32
    return %arg0, %c0_i32, %c0_i32_0 : i32, i32, i32
  }
  func.func @transform_3(%arg0: i32) -> (i32, i32, i32) {
    %c0_i32 = arith.constant 0 : i32
    %c0_i32_0 = arith.constant 0 : i32
    %c0_i32_1 = arith.constant 0 : i32
    return %arg0, %c0_i32, %c0_i32_0 : i32, i32, i32
  }
}

</mosaic_0001>

<llo_original>
// kernel: tpu_custom_call.1
$region0: #{tpu_custom_call.1}
  #allocation0 [shape = 'u32[]', space=smem, size = 0x4, offset = 0x4, fixed_abs, tag = 'smem constant byte address 0x4 - core index']
  #allocation1 [shape = 'u32[144,128]{1,0:T(1,128)}', space=vmem, size = 0x12000, scoped, tag = 'internal scratch']
  %s0 = inlined_call_operand.vmem [shape: f32[16,1,1], index: 0, kind: input, shape index: {}]
  %s1 = inlined_call_operand.vmem [shape: f32[16,1,1], index: 1, kind: input, shape index: {}]
  %s2 = inlined_call_operand.hbm [shape: f32[16,4,256], index: 2, kind: input, shape index: {}]
  %s3 = inlined_call_operand.hbm [shape: f32[16,4,256], index: 3, kind: output, shape index: {}]
  %s4 = sld [smem:[#allocation0]]
  $region49: #{tpu_custom_call.1} parent=0
    _
  %s6 = ssub.s32 1, %s4
  %s7 = scalar_select 0, %s6, %s4
  $region1: #{tpu_custom_call.1} parent=0
    #allocation2 [shape = 'u8[32768]{0}', space=vmem, size = 0x8000, scoped, tag = 'input window, operand 2']
    #allocation3 [shape = 's32[2]{0}', space=sflag, size = 0x8, scoped, tag = 'scoped memory for tpu_custom_call.1']
    #allocation4 [shape = 's32[2]{0}', space=sflag, size = 0x8, scoped, tag = 'scoped memory for tpu_custom_call.1']
    #allocation5 [shape = 'u8[32768]{0}', space=vmem, size = 0x8000, scoped, tag = 'output window, operand 0']
    %8 = vsyncpa [#allocation3], 0
    %s9 = scalar_lea.sflag [#allocation3], 1
    %10 = vsyncpa %s9, 0
    %11 = vsyncpa [#allocation4], 0
    %s12 = scalar_lea.sflag [#allocation4], 1
    %13 = vsyncpa %s12, 0
    loop: start=0, step=1, limit=6
    $region2: #{tpu_custom_call.1} parent=1 // loop_pre_header
      _
    $region3: #{tpu_custom_call.1} parent=1 // loop_header
      %s15 = sphi 0, %s19
      %p16 = scmp.ge.s32.totalorder %s15, 6
      %s25 = sphi 0, %s27
      %s28 = sphi 0, %s25
      %s29 = sphi 0, %s28
      %s45 = sphi 0, %s29
      %s51 = sphi 0, %s53
      %s54 = sphi 0, %s51
      %s55 = sphi 0, %s54
      %s71 = sphi 0, %s55
      %s77 = sphi 0, %s79
      %s80 = sphi 0, %s77
      %s81 = sphi 0, %s80
      %s97 = sphi 0, %s81
      %s103 = sphi 0, %s105
      %s106 = sphi 0, %s103
      %s107 = sphi 0, %s106
      %s123 = sphi 0, %s107
    $region4: #{tpu_custom_call.1} parent=1 // loop_header_branch
      %18 = sbr.rel (%p16) target = $region8
    $region5: #{tpu_custom_call.1} parent=1 // loop_body
      %s20 = ssub.s32 %s15, 1
      %s21 = ssub.s32 %s15, 2
      %s22 = sadd.s32 %s15, 1
      %s23 = ssub.s32 %s15, %s22
      %p24 = scmp.eq.s32.totalorder %s23, 0
      %s26 = sadd.s32 %s25, 1
      %s27 = scalar_select %p24, %s25, %s26
      %p30 = pneg %p24
      %p31 = scmp.eq.s32.totalorder %s15, 3
      %p32 = por %p30, %p31
      %p33 = scmp.ne.s32.totalorder %s25, %s28
      %p34 = scmp.eq.s32.totalorder %s15, 0
      %p35 = por %p33, %p34
      %p36 = scmp.ne.s32.totalorder %s25, %s28
      %p37 = scmp.eq.s32.totalorder %s20, 3
      %p38 = por %p36, %p37
      %p39 = scmp.ne.s32.totalorder %s28, %s29
      %p40 = scmp.eq.s32.totalorder %s20, 0
      %p41 = por %p39, %p40
      %p42 = scmp.ne.s32.totalorder %s28, %s29
      %p43 = scmp.eq.s32.totalorder %s21, 3
      %p44 = por %p42, %p43
      %p46 = scmp.ne.s32.totalorder %s29, %s45
      %p47 = scmp.eq.s32.totalorder %s21, 0
      %p48 = por %p46, %p47
      %s49 = ssub.s32 %s15, %s22
      %p50 = scmp.eq.s32.totalorder %s49, 0
      %s52 = sadd.s32 %s51, 1
      %s53 = scalar_select %p50, %s51, %s52
      %p56 = pneg %p50
      %p57 = scmp.eq.s32.totalorder %s15, 3
      %p58 = por %p56, %p57
      %p59 = scmp.ne.s32.totalorder %s51, %s54
      %p60 = scmp.eq.s32.totalorder %s15, 0
      %p61 = por %p59, %p60
      %p62 = scmp.ne.s32.totalorder %s51, %s54
      %p63 = scmp.eq.s32.totalorder %s20, 3
      %p64 = por %p62, %p63
      %p65 = scmp.ne.s32.totalorder %s54, %s55
      %p66 = scmp.eq.s32.totalorder %s20, 0
      %p67 = por %p65, %p66
      %p68 = scmp.ne.s32.totalorder %s54, %s55
      %p69 = scmp.eq.s32.totalorder %s21, 3
      %p70 = por %p68, %p69
      %p72 = scmp.ne.s32.totalorder %s55, %s71
      %p73 = scmp.eq.s32.totalorder %s21, 0
      %p74 = por %p72, %p73
      %s75 = ssub.s32 %s15, %s22
      %p76 = scmp.eq.s32.totalorder %s75, 0
      %s78 = sadd.s32 %s77, 1
      %s79 = scalar_select %p76, %s77, %s78
      %p82 = pneg %p76
      %p83 = scmp.eq.s32.totalorder %s15, 3
      %p84 = por %p82, %p83
      %p85 = scmp.ne.s32.totalorder %s77, %s80
      %p86 = scmp.eq.s32.totalorder %s15, 0
      %p87 = por %p85, %p86
      %p88 = scmp.ne.s32.totalorder %s77, %s80
      %p89 = scmp.eq.s32.totalorder %s20, 3
      %p90 = por %p88, %p89
      %p91 = scmp.ne.s32.totalorder %s80, %s81
      %p92 = scmp.eq.s32.totalorder %s20, 0
      %p93 = por %p91, %p92
      %p94 = scmp.ne.s32.totalorder %s80, %s81
      %p95 = scmp.eq.s32.totalorder %s21, 3
      %p96 = por %p94, %p95
      %p98 = scmp.ne.s32.totalorder %s81, %s97
      %p99 = scmp.eq.s32.totalorder %s21, 0
      %p100 = por %p98, %p99
      %s101 = ssub.s32 %s15, %s22
      %p102 = scmp.eq.s32.totalorder %s101, 0
      %s104 = sadd.s32 %s103, 1
      %s105 = scalar_select %p102, %s103, %s104
      %p108 = pneg %p102
      %p109 = scmp.eq.s32.totalorder %s15, 3
      %p110 = por %p108, %p109
      %p111 = scmp.ne.s32.totalorder %s103, %s106
      %p112 = scmp.eq.s32.totalorder %s15, 0
      %p113 = por %p111, %p112
      %p114 = scmp.ne.s32.totalorder %s103, %s106
      %p115 = scmp.eq.s32.totalorder %s20, 3
      %p116 = por %p114, %p115
      %p117 = scmp.ne.s32.totalorder %s106, %s107
      %p118 = scmp.eq.s32.totalorder %s20, 0
      %p119 = por %p117, %p118
      %p120 = scmp.ne.s32.totalorder %s106, %s107
      %p121 = scmp.eq.s32.totalorder %s21, 3
      %p122 = por %p120, %p121
      %p124 = scmp.ne.s32.totalorder %s107, %s123
      %p125 = scmp.eq.s32.totalorder %s21, 0
      %p126 = por %p124, %p125
      %p127 = scmp.le.s32.totalorder 1, %s15
      %p128 = scmp.lt.s32.totalorder %s15, 5
      %p129 = pnand %p127, %p128
      %p130 = pneg %p129
      // Predicated region
      $region9: #{tpu_custom_call.1} parent=5 // pred_check
        _
      $region10: #{tpu_custom_call.1} parent=5 // pred_check_branch
        %132 = sbr.rel (%p129) target = $region12
      $region11: #{tpu_custom_call.1} parent=5 // pred_region
        %s133 = ssub.s32 %s15, 1
      $region12: #{tpu_custom_call.1} parent=5 // pred_fallthru
        _
      %p134 = scmp.lt.s32.totalorder %s15, 4
      // Predicated region
      $region13: #{tpu_custom_call.1} parent=5 // pred_check
        %p135 = pneg %p134
      $region14: #{tpu_custom_call.1} parent=5 // pred_check_branch
        %137 = sbr.rel (%p135) target = $region16
      $region15: #{tpu_custom_call.1} parent=5 // pred_region
        // Predicated region
        $region17: #{tpu_custom_call.1} parent=15 // pred_check
          %p138 = pneg %p35
        $region18: #{tpu_custom_call.1} parent=15 // pred_check_branch
          %140 = sbr.rel (%p138) target = $region20
        $region19: #{tpu_custom_call.1} parent=15 // pred_region
          %s141 = smul.u32 4, %s15
          %p142 = scmp.lt.s32.totalorder %s141, 15
          %s143 = scalar_select %p142, %s141, 15
          %s144 = scalar_lea.vmem %s0, %s143
          %s145 = smul.u32 4, %s15
        $region20: #{tpu_custom_call.1} parent=15 // pred_fallthru
          _
        // Predicated region
        $region21: #{tpu_custom_call.1} parent=15 // pred_check
          %p146 = pneg %p61
        $region22: #{tpu_custom_call.1} parent=15 // pred_check_branch
          %148 = sbr.rel (%p146) target = $region24
        $region23: #{tpu_custom_call.1} parent=15 // pred_region
          %s149 = smul.u32 4, %s15
          %p150 = scmp.lt.s32.totalorder %s149, 15
          %s151 = scalar_select %p150, %s149, 15
          %s152 = scalar_lea.vmem %s1, %s151
          %s153 = smul.u32 4, %s15
        $region24: #{tpu_custom_call.1} parent=15 // pred_fallthru
          _
        // Predicated region
        $region25: #{tpu_custom_call.1} parent=15 // pred_check
          %p154 = pneg %p87
        $region26: #{tpu_custom_call.1} parent=15 // pred_check_branch
          %156 = sbr.rel (%p154) target = $region28
        $region27: #{tpu_custom_call.1} parent=15 // pred_region
          %s157 = sand.u32 %s77, 1
          %s158 = scalar_lea.sflag [#allocation3], %s157
          %s159 = sand.u32 %s77, 1
          %s160 = smul.addr %s159, 32
          %s161 = scalar_lea.vmem [#allocation2], %s160
          %s162 = smul.u32 4, %s15
          %s164 = ssub.s32 512, 512
          %165 = vsyncadd %s158, %s164
          %s166 = smul.addr %s162, 2
          %s167 = smul.addr %s166, 64
          %s168 = scalar_lea.hbm %s2, %s167
          %s169 = sshll.u32 %s161, 4
          %s170 = int_to_ptr.vmem [resolvable:$true] %s169
          %175 = dma.hbm_to_vmem [thread:$0]  %s168, 512, %s170, %s158, 128, 128, 8
        $region28: #{tpu_custom_call.1} parent=15 // pred_fallthru
          _
      $region16: #{tpu_custom_call.1} parent=5 // pred_fallthru
        _
      %p176 = scmp.le.s32.totalorder 1, %s15
      %p177 = scmp.lt.s32.totalorder %s15, 5
      %p178 = pnand %p176, %p177
      %p179 = pneg %p178
      // Predicated region
      $region29: #{tpu_custom_call.1} parent=5 // pred_check
        _
      $region30: #{tpu_custom_call.1} parent=5 // pred_check_branch
        %181 = sbr.rel (%p178) target = $region32
      $region31: #{tpu_custom_call.1} parent=5 // pred_region
        %s182 = ssub.s32 %s15, 1
        %s183 = sand.u32 %s80, 1
        %s184 = scalar_lea.sflag [#allocation3], %s183
        %s185 = sand.u32 %s80, 1
        %s186 = smul.addr %s185, 32
        %s187 = scalar_lea.vmem [#allocation2], %s186
        // Predicated region
        $region33: #{tpu_custom_call.1} parent=31 // pred_check
          %p188 = pneg %p93
        $region34: #{tpu_custom_call.1} parent=31 // pred_check_branch
          %190 = sbr.rel (%p188) target = $region36
        $region35: #{tpu_custom_call.1} parent=31 // pred_region
          %191 = dma.done %s184, 512
        $region36: #{tpu_custom_call.1} parent=31 // pred_fallthru
          _
        %s192 = smul.u32 4, %s20
        %p193 = scmp.lt.s32.totalorder %s192, 15
        %s194 = scalar_select %p193, %s192, 15
        %s195 = scalar_lea.vmem %s0, %s194
        %p196 = pneg %p41
        %p197 = pneg %p38
        %s198 = smul.u32 4, %s20
        %p199 = scmp.lt.s32.totalorder %s198, 15
        %s200 = scalar_select %p199, %s198, 15
        %s201 = scalar_lea.vmem %s1, %s200
        %p202 = pneg %p67
        %p203 = pneg %p64
        %s204 = sand.u32 %s80, 1
        %s205 = scalar_lea.sflag [#allocation3], %s204
        %s206 = sand.u32 %s80, 1
        %s207 = smul.addr %s206, 32
        %s208 = scalar_lea.vmem [#allocation2], %s207
        %p209 = pneg %p93
        %p210 = pneg %p90
        %p211 = pneg %p119
        %p212 = pneg %p116
        %s213 = sand.u32 %s106, 1
        %s214 = scalar_lea.sflag [#allocation4], %s213
        %s215 = sand.u32 %s106, 1
        %s216 = smul.addr %s215, 32
        %s217 = scalar_lea.vmem [#allocation5], %s216
        %s218 = smul.u32 4, %s20
        %p219 = scmp.lt.s32.totalorder %s218, 15
        %s220 = scalar_select %p219, %s218, 15
        %s221 = scalar_lea.vmem %s0, %s220
        %s222 = smul.u32 4, %s20
        %s223 = smul.u32 4, %s20
        %p224 = scmp.lt.s32.totalorder %s223, 15
        %s225 = scalar_select %p224, %s223, 15
        %s226 = scalar_lea.vmem %s1, %s225
        %s227 = smul.u32 4, %s20
        %s228 = smul.u32 4, %s20
        %s229 = smul.u32 4, %s20
        %v230 = vld [vmem:[%s187] sm:$0xff]
        %v231 = vld [vmem:[%s187 + $0x8] sm:$0xff]
        %v232 = vld [vmem:[%s187 + $0x10] sm:$0xff]
        %v233 = vld [vmem:[%s187 + $0x18] sm:$0xff]
        %v238 = vcombine.high %v230, %v230
        %v239 = vcombine.high %v231, %v231
        %v240 = vcombine.high %v232, %v232
        %v241 = vcombine.high %v233, %v233
        %vm246 = vcmask 1043456
        %v247 = vsel %vm246, %v230, 0.0
        %v248 = vsel %vm246, %v238, 0.0
        %v249 = vadd.f32 %v247, %v248
        %250 = vadd.xlane.f32.xlu0 %v249
        %v251 = vpop.xlane.xlu0 %250
        %v252 = vsel %vm246, %v231, 0.0
        %v253 = vsel %vm246, %v239, 0.0
        %v254 = vadd.f32 %v252, %v253
        %255 = vadd.xlane.f32.xlu0 %v254
        %v256 = vpop.xlane.xlu0 %255
        %v257 = vsel %vm246, %v232, 0.0
        %v258 = vsel %vm246, %v240, 0.0
        %v259 = vadd.f32 %v257, %v258
        %260 = vadd.xlane.f32.xlu0 %v259
        %v261 = vpop.xlane.xlu0 %260
        %v262 = vsel %vm246, %v233, 0.0
        %v263 = vsel %vm246, %v241, 0.0
        %v264 = vadd.f32 %v262, %v263
        %265 = vadd.xlane.f32.xlu0 %v264
        %v266 = vpop.xlane.xlu0 %265
        %v267 = vmul.f32 %v251, 0.00390625
        %v268 = vmul.f32 %v256, 0.00390625
        %v269 = vmul.f32 %v261, 0.00390625
        %v270 = vmul.f32 %v266, 0.00390625
        %v276 = vunpack.c.l.s4 839922192
        %v277 = vunpack.c.0.s8 %v276
        %v278 = vlaneseq
        %v279 = vshrl.u32 %v278, 7
        %v280 = vsub.s32 %v277, %v279
        %v281 = vrot.slane %v267, %v280
        %v283 = vunpack.c.l.s4 839922192
        %v284 = vunpack.c.0.s8 %v283
        %v285 = vlaneseq
        %v286 = vshrl.u32 %v285, 7
        %v287 = vsub.s32 %v284, %v286
        %v288 = vrot.slane %v268, %v287
        %v290 = vunpack.c.l.s4 839922192
        %v291 = vunpack.c.0.s8 %v290
        %v292 = vlaneseq
        %v293 = vshrl.u32 %v292, 7
        %v294 = vsub.s32 %v291, %v293
        %v295 = vrot.slane %v269, %v294
        %v297 = vunpack.c.l.s4 839922192
        %v298 = vunpack.c.0.s8 %v297
        %v299 = vlaneseq
        %v300 = vshrl.u32 %v299, 7
        %v301 = vsub.s32 %v298, %v300
        %v302 = vrot.slane %v270, %v301
        %v307 = vmul.f32 %v230, %v281
        %v308 = vmul.f32 %v231, %v288
        %v309 = vmul.f32 %v232, %v295
        %v310 = vmul.f32 %v233, %v302
        %v315 = vcombine.high %v307, %v307
        %v316 = vcombine.high %v308, %v308
        %v317 = vcombine.high %v309, %v309
        %v318 = vcombine.high %v310, %v310
        %v323 = vsel %vm246, %v307, 0.0
        %v324 = vrot.slane %v323, 4
        %v325 = vadd.f32 %v323, %v324
        %v326 = vrot.slane %v325, 2
        %v327 = vadd.f32 %v325, %v326
        %v328 = vrot.slane %v327, 1
        %v329 = vadd.f32 %v327, %v328
        %v330 = vsel %vm246, %v315, 0.0
        %v331 = vrot.slane %v330, 4
        %v332 = vadd.f32 %v330, %v331
        %v333 = vrot.slane %v332, 2
        %v334 = vadd.f32 %v332, %v333
        %v335 = vrot.slane %v334, 1
        %v336 = vadd.f32 %v334, %v335
        %v337 = vsel %vm246, %v308, 0.0
        %v338 = vrot.slane %v337, 4
        %v339 = vadd.f32 %v337, %v338
        %v340 = vrot.slane %v339, 2
        %v341 = vadd.f32 %v339, %v340
        %v342 = vrot.slane %v341, 1
        %v343 = vadd.f32 %v341, %v342
        %v344 = vsel %vm246, %v316, 0.0
        %v345 = vrot.slane %v344, 4
        %v346 = vadd.f32 %v344, %v345
        %v347 = vrot.slane %v346, 2
        %v348 = vadd.f32 %v346, %v347
        %v349 = vrot.slane %v348, 1
        %v350 = vadd.f32 %v348, %v349
        %v351 = vsel %vm246, %v309, 0.0
        %v352 = vrot.slane %v351, 4
        %v353 = vadd.f32 %v351, %v352
        %v354 = vrot.slane %v353, 2
        %v355 = vadd.f32 %v353, %v354
        %v356 = vrot.slane %v355, 1
        %v357 = vadd.f32 %v355, %v356
        %v358 = vsel %vm246, %v317, 0.0
        %v359 = vrot.slane %v358, 4
        %v360 = vadd.f32 %v358, %v359
        %v361 = vrot.slane %v360, 2
        %v362 = vadd.f32 %v360, %v361
        %v363 = vrot.slane %v362, 1
        %v364 = vadd.f32 %v362, %v363
        %v365 = vsel %vm246, %v310, 0.0
        %v366 = vrot.slane %v365, 4
        %v367 = vadd.f32 %v365, %v366
        %v368 = vrot.slane %v367, 2
        %v369 = vadd.f32 %v367, %v368
        %v370 = vrot.slane %v369, 1
        %v371 = vadd.f32 %v369, %v370
        %v372 = vsel %vm246, %v318, 0.0
        %v373 = vrot.slane %v372, 4
        %v374 = vadd.f32 %v372, %v373
        %v375 = vrot.slane %v374, 2
        %v376 = vadd.f32 %v374, %v375
        %v377 = vrot.slane %v376, 1
        %v378 = vadd.f32 %v376, %v377
        %v379 = vadd.f32 %v329, %v336
        %380 = vadd.xlane.f32.xlu0 %v379
        %v381 = vpop.xlane.xlu0 %380
        %v382 = vadd.f32 %v343, %v350
        %383 = vadd.xlane.f32.xlu0 %v382
        %v384 = vpop.xlane.xlu0 %383
        %v385 = vadd.f32 %v357, %v364
        %386 = vadd.xlane.f32.xlu0 %v385
        %v387 = vpop.xlane.xlu0 %386
        %v388 = vadd.f32 %v371, %v378
        %389 = vadd.xlane.f32.xlu0 %v388
        %v390 = vpop.xlane.xlu0 %389
        %v391 = vmul.f32 %v381, 0.00390625
        %v392 = vmul.f32 %v384, 0.00390625
        %v393 = vmul.f32 %v387, 0.00390625
        %v394 = vmul.f32 %v390, 0.00390625
        %v395 = vsub.f32 %v329, %v391
        %v396 = vsub.f32 %v336, %v391
        %v397 = vsub.f32 %v343, %v392
        %v398 = vsub.f32 %v350, %v392
        %v399 = vsub.f32 %v357, %v393
        %v400 = vsub.f32 %v364, %v393
        %v401 = vsub.f32 %v371, %v394
        %v402 = vsub.f32 %v378, %v394
        %v403 = vmul.f32 %v395, %v395
        %v404 = vmul.f32 %v396, %v396
        %v405 = vmul.f32 %v397, %v397
        %v406 = vmul.f32 %v398, %v398
        %v407 = vmul.f32 %v399, %v399
        %v408 = vmul.f32 %v400, %v400
        %v409 = vmul.f32 %v401, %v401
        %v410 = vmul.f32 %v402, %v402
        %v411 = vadd.f32 %v403, %v404
        %412 = vadd.xlane.f32.xlu0 %v411
        %v413 = vpop.xlane.xlu0 %412
        %v414 = vadd.f32 %v405, %v406
        %415 = vadd.xlane.f32.xlu0 %v414
        %v416 = vpop.xlane.xlu0 %415
        %v417 = vadd.f32 %v407, %v408
        %418 = vadd.xlane.f32.xlu0 %v417
        %v419 = vpop.xlane.xlu0 %418
        %v420 = vadd.f32 %v409, %v410
        %421 = vadd.xlane.f32.xlu0 %v420
        %v422 = vpop.xlane.xlu0 %421
        %v423 = vmul.f32 %v413, 0.003921569
        %v424 = vmul.f32 %v416, 0.003921569
        %v425 = vmul.f32 %v419, 0.003921569
        %v426 = vmul.f32 %v422, 0.003921569
        %v427 = vrsqrt.pop %v423
        %v428 = vmul.f32 %v423, %v427
        %vm429 = vcmp.eq.f32.partialorder %v423, inf
        %v430 = vsel %vm429, %v423, %v428
        %vm431 = vcmp.eq.f32.partialorder %v423, 0.0
        %v432 = vand.u32 %v423, 2147483648
        %v433 = vsel %vm431, %v432, %v430
        %v434 = vrsqrt.pop %v424
        %v435 = vmul.f32 %v424, %v434
        %vm436 = vcmp.eq.f32.partialorder %v424, inf
        %v437 = vsel %vm436, %v424, %v435
        %vm438 = vcmp.eq.f32.partialorder %v424, 0.0
        %v439 = vand.u32 %v424, 2147483648
        %v440 = vsel %vm438, %v439, %v437
        %v441 = vrsqrt.pop %v425
        %v442 = vmul.f32 %v425, %v441
        %vm443 = vcmp.eq.f32.partialorder %v425, inf
        %v444 = vsel %vm443, %v425, %v442
        %vm445 = vcmp.eq.f32.partialorder %v425, 0.0
        %v446 = vand.u32 %v425, 2147483648
        %v447 = vsel %vm445, %v446, %v444
        %v448 = vrsqrt.pop %v426
        %v449 = vmul.f32 %v426, %v448
        %vm450 = vcmp.eq.f32.partialorder %v426, inf
        %v451 = vsel %vm450, %v426, %v449
        %vm452 = vcmp.eq.f32.partialorder %v426, 0.0
        %v453 = vand.u32 %v426, 2147483648
        %v454 = vsel %vm452, %v453, %v451
        %v455 = vadd.f32 %v433, 1e-05
        %v456 = vadd.f32 %v440, 1e-05
        %v457 = vadd.f32 %v447, 1e-05
        %v458 = vadd.f32 %v454, 1e-05
        %v459 = vrcp.pop %v455
        %v460 = vmul.f32 %v395, %v459
        %v461 = vmul.f32 %v396, %v459
        %v462 = vrcp.pop %v456
        %v463 = vmul.f32 %v397, %v462
        %v464 = vmul.f32 %v398, %v462
        %v465 = vrcp.pop %v457
        %v466 = vmul.f32 %v399, %v465
        %v467 = vmul.f32 %v400, %v465
        %v468 = vrcp.pop %v458
        %v469 = vmul.f32 %v401, %v468
        %v470 = vmul.f32 %v402, %v468
        %v471 = vld [vmem:[%s221] sm:$0x1]
        %v472 = vld [vmem:[%s221 + $0x1] sm:$0x1]
        %v473 = vld [vmem:[%s221 + $0x2] sm:$0x1]
        %v474 = vld [vmem:[%s221 + $0x3] sm:$0x1]
        %476 = vset.pattern.permute.xlu0 0
        %477 = vperm.xlu0 %476, %v471
        %v478 = vpop.permute.xlu0 %477
        %v480 = vlaneseq
        %v481 = vshrl.u32 %v480, 7
        %v482 = vsub.s32 0, %v481
        %v483 = vrot.slane %v478, %v482
        %485 = vset.pattern.permute.xlu0 0
        %486 = vperm.xlu0 %485, %v472
        %v487 = vpop.permute.xlu0 %486
        %v489 = vlaneseq
        %v490 = vshrl.u32 %v489, 7
        %v491 = vsub.s32 0, %v490
        %v492 = vrot.slane %v487, %v491
        %494 = vset.pattern.permute.xlu0 0
        %495 = vperm.xlu0 %494, %v473
        %v496 = vpop.permute.xlu0 %495
        %v498 = vlaneseq
        %v499 = vshrl.u32 %v498, 7
        %v500 = vsub.s32 0, %v499
        %v501 = vrot.slane %v496, %v500
        %503 = vset.pattern.permute.xlu0 0
        %504 = vperm.xlu0 %503, %v474
        %v505 = vpop.permute.xlu0 %504
        %v507 = vlaneseq
        %v508 = vshrl.u32 %v507, 7
        %v509 = vsub.s32 0, %v508
        %v510 = vrot.slane %v505, %v509
        %v511 = vmul.f32 %v460, %v483
        %v512 = vmul.f32 %v461, %v483
        %v513 = vmul.f32 %v463, %v492
        %v514 = vmul.f32 %v464, %v492
        %v515 = vmul.f32 %v466, %v501
        %v516 = vmul.f32 %v467, %v501
        %v517 = vmul.f32 %v469, %v510
        %v518 = vmul.f32 %v470, %v510
        %v519 = vld [vmem:[%s226] sm:$0x1]
        %v520 = vld [vmem:[%s226 + $0x1] sm:$0x1]
        %v521 = vld [vmem:[%s226 + $0x2] sm:$0x1]
        %v522 = vld [vmem:[%s226 + $0x3] sm:$0x1]
        %524 = vset.pattern.permute.xlu0 0
        %525 = vperm.xlu0 %524, %v519
        %v526 = vpop.permute.xlu0 %525
        %v528 = vlaneseq
        %v529 = vshrl.u32 %v528, 7
        %v530 = vsub.s32 0, %v529
        %v531 = vrot.slane %v526, %v530
        %533 = vset.pattern.permute.xlu0 0
        %534 = vperm.xlu0 %533, %v520
        %v535 = vpop.permute.xlu0 %534
        %v537 = vlaneseq
        %v538 = vshrl.u32 %v537, 7
        %v539 = vsub.s32 0, %v538
        %v540 = vrot.slane %v535, %v539
        %542 = vset.pattern.permute.xlu0 0
        %543 = vperm.xlu0 %542, %v521
        %v544 = vpop.permute.xlu0 %543
        %v546 = vlaneseq
        %v547 = vshrl.u32 %v546, 7
        %v548 = vsub.s32 0, %v547
        %v549 = vrot.slane %v544, %v548
        %551 = vset.pattern.permute.xlu0 0
        %552 = vperm.xlu0 %551, %v522
        %v553 = vpop.permute.xlu0 %552
        %v555 = vlaneseq
        %v556 = vshrl.u32 %v555, 7
        %v557 = vsub.s32 0, %v556
        %v558 = vrot.slane %v553, %v557
        %v559 = vadd.f32 %v511, %v531
        %v560 = vadd.f32 %v512, %v531
        %v561 = vadd.f32 %v513, %v540
        %v562 = vadd.f32 %v514, %v540
        %v563 = vadd.f32 %v515, %v549
        %v564 = vadd.f32 %v516, %v549
        %v565 = vadd.f32 %v517, %v558
        %v566 = vadd.f32 %v518, %v558
        %v567 = vxor.u32 %v559, 2147483648
        %v568 = vxor.u32 %v560, 2147483648
        %v569 = vxor.u32 %v561, 2147483648
        %v570 = vxor.u32 %v562, 2147483648
        %v571 = vxor.u32 %v563, 2147483648
        %v572 = vxor.u32 %v564, 2147483648
        %v573 = vxor.u32 %v565, 2147483648
        %v574 = vxor.u32 %v566, 2147483648
        %v575 = vmul.f32 %v567, 1.442695
        %v576 = vpow.pop %v575
        %v577 = vmul.f32 %v568, 1.442695
        %v578 = vpow.pop %v577
        %v579 = vmul.f32 %v569, 1.442695
        %v580 = vpow.pop %v579
        %v581 = vmul.f32 %v570, 1.442695
        %v582 = vpow.pop %v581
        %v583 = vmul.f32 %v571, 1.442695
        %v584 = vpow.pop %v583
        %v585 = vmul.f32 %v572, 1.442695
        %v586 = vpow.pop %v585
        %v587 = vmul.f32 %v573, 1.442695
        %v588 = vpow.pop %v587
        %v589 = vmul.f32 %v574, 1.442695
        %v590 = vpow.pop %v589
        %v591 = vadd.f32 %v576, 1.0
        %v592 = vadd.f32 %v578, 1.0
        %v593 = vadd.f32 %v580, 1.0
        %v594 = vadd.f32 %v582, 1.0
        %v595 = vadd.f32 %v584, 1.0
        %v596 = vadd.f32 %v586, 1.0
        %v597 = vadd.f32 %v588, 1.0
        %v598 = vadd.f32 %v590, 1.0
        %v599 = vrcp.pop %v591
        %v600 = vmul.f32 1.0, %v599
        %v601 = vrcp.pop %v592
        %v602 = vmul.f32 1.0, %v601
        %v603 = vrcp.pop %v593
        %v604 = vmul.f32 1.0, %v603
        %v605 = vrcp.pop %v594
        %v606 = vmul.f32 1.0, %v605
        %v607 = vrcp.pop %v595
        %v608 = vmul.f32 1.0, %v607
        %v609 = vrcp.pop %v596
        %v610 = vmul.f32 1.0, %v609
        %v611 = vrcp.pop %v597
        %v612 = vmul.f32 1.0, %v611
        %v613 = vrcp.pop %v598
        %v614 = vmul.f32 1.0, %v613
        %v623 = vcombine.low %v600, %v602
        %v624 = vcombine.low %v604, %v606
        %v625 = vcombine.low %v608, %v610
        %v626 = vcombine.low %v612, %v614
        %v631 = vmul.f32 %v230, %v623
        %v632 = vmul.f32 %v231, %v624
        %v633 = vmul.f32 %v232, %v625
        %v634 = vmul.f32 %v233, %v626
        %635 = vst [vmem:[%s217] sm:$0xff] %v631
        %636 = vst [vmem:[%s217 + $0x8] sm:$0xff] %v632
        %637 = vst [vmem:[%s217 + $0x10] sm:$0xff] %v633
        %638 = vst [vmem:[%s217 + $0x18] sm:$0xff] %v634
        %s639 = sand.u32 %s106, 1
        %s640 = scalar_lea.sflag [#allocation4], %s639
        %s641 = sand.u32 %s106, 1
        %s642 = smul.addr %s641, 32
        %s643 = scalar_lea.vmem [#allocation5], %s642
        // Predicated region
        $region37: #{tpu_custom_call.1} parent=31 // pred_check
          %p644 = pneg %p116
        $region38: #{tpu_custom_call.1} parent=31 // pred_check_branch
          %646 = sbr.rel (%p644) target = $region40
        $region39: #{tpu_custom_call.1} parent=31 // pred_region
          %s647 = smul.u32 4, %s20
          %s649 = ssub.s32 512, 512
          %650 = vsyncadd %s640, %s649
          %s651 = smul.addr %s647, 2
          %s652 = smul.addr %s651, 64
          %s653 = scalar_lea.hbm %s3, %s652
          %s654 = sshll.u32 %s643, 4
          %s655 = int_to_ptr.vmem [resolvable:$true] %s654
          %660 = dma.vmem_to_hbm [thread:$0]  %s655, 512, %s653, %s640, 128, 128, 8
        $region40: #{tpu_custom_call.1} parent=31 // pred_fallthru
          _
      $region32: #{tpu_custom_call.1} parent=5 // pred_fallthru
        _
      %p661 = scmp.le.s32.totalorder 2, %s15
      // Predicated region
      $region41: #{tpu_custom_call.1} parent=5 // pred_check
        %p662 = pneg %p661
      $region42: #{tpu_custom_call.1} parent=5 // pred_check_branch
        %664 = sbr.rel (%p662) target = $region44
      $region43: #{tpu_custom_call.1} parent=5 // pred_region
        %s665 = ssub.s32 %s15, 2
        // Predicated region
        $region45: #{tpu_custom_call.1} parent=43 // pred_check
          %p666 = pneg %p122
        $region46: #{tpu_custom_call.1} parent=43 // pred_check_branch
          %668 = sbr.rel (%p666) target = $region48
        $region47: #{tpu_custom_call.1} parent=43 // pred_region
          %s669 = sand.u32 %s107, 1
          %s670 = scalar_lea.sflag [#allocation4], %s669
          %s671 = sand.u32 %s107, 1
          %s672 = smul.addr %s671, 32
          %s673 = scalar_lea.vmem [#allocation5], %s672
          %674 = dma.done %s670, 512
        $region48: #{tpu_custom_call.1} parent=43 // pred_fallthru
          _
      $region44: #{tpu_custom_call.1} parent=5 // pred_fallthru
        _
    $region6: #{tpu_custom_call.1} parent=1 // loop_footer
      %s19 = sadd.s32 1, %s15
    $region7: #{tpu_custom_call.1} parent=1 // loop_footer_branch
      %14 = sbr.rel target = $region3
    $region8: #{tpu_custom_call.1} parent=1 // loop_exit
      _
    %675 = vsyncpa [#allocation3], 1
    %s676 = scalar_lea.sflag [#allocation3], 1
    %677 = vsyncpa %s676, 1
    %678 = vsyncpa [#allocation4], 1
    %s679 = scalar_lea.sflag [#allocation4], 1
    %680 = vsyncpa %s679, 1

</llo_original>
